<compile_context>
chip_gen: v7x
topology: tpu7x:2x2x1
jax: 0.10.0
libtpu: 0.0.40
codegen_flags: <defaults>
</compile_context>

<pallas_src>
import jax
import jax.numpy as jnp
from jax.experimental import pallas as pl
from jax.experimental.pallas import tpu as pltpu


def _cca_kernel(x_ref, w1t_ref, b1_ref, w2_ref, b2_ref, out_ref):
    # x_ref / out_ref : (TB, C, HW)  TB images, spatial in the lane dim, native dtype
    # w1t_ref         : (C, mid)     conv_du[0].weight transposed (in, out), f32
    # b1_ref          : (1, mid)     f32
    # w2_ref          : (C, mid)     conv_du[2].weight (out, in), f32
    # b2_ref          : (C, 1)       f32
    x = x_ref[...].astype(jnp.float32)                    # (TB, C, HW)
    inv_hw = 1.0 / x.shape[-1]

    # ---- contrast (population std over spatial) + global average pool, one pass ----
    s = jnp.sum(x, axis=-1, keepdims=True)                # (TB, C, 1)
    ss = jnp.sum(x * x, axis=-1, keepdims=True)           # (TB, C, 1)
    mean = s * inv_hw
    var = jnp.maximum(ss * inv_hw - mean * mean, 0.0)
    y = jnp.sqrt(var) + mean                              # (TB, C, 1)

    # ---- conv_du: 1x1 conv -> ReLU -> 1x1 conv -> sigmoid (tiny, VPU only) ----
    w1t = w1t_ref[...][None, :, :]                        # (1, C, mid)
    h = jnp.sum(w1t * y, axis=1, keepdims=True) + b1_ref[...][None, :, :]   # (TB, 1, mid)
    h = jnp.maximum(h, 0.0)
    w2 = w2_ref[...][None, :, :]                          # (1, C, mid)
    t = jnp.sum(w2 * h, axis=2, keepdims=True) + b2_ref[...][None, :, :]    # (TB, C, 1)
    z = jax.nn.sigmoid(t)                                 # exp/recip -> EUP slot

    # ---- channel-wise rescale (broadcast over lane/spatial), store in native dtype ----
    out_ref[...] = (x * z).astype(out_ref.dtype)


def _pick_batch_block(B, per_image_bytes, target_bytes=4 << 20):
    """Images per grid step: target MiB-scale tiles, but keep >=2 steps for v7x."""
    tb = max(1, min(B, target_bytes // max(per_image_bytes, 1)))
    if B >= 2:
        tb = min(tb, (B + 1) // 2)   # leave >=2 parallel steps to feed both v7x TCs
    while B % tb:                    # avoid partial blocks
        tb -= 1
    return tb


def cca_layer(x_nchw, w1, b1, w2, b2):
    """x_nchw: (B, C, H, W) any float dtype.  w1: (mid, C) [1x1 conv], b1: (mid,),
    w2: (C, mid) [1x1 conv], b2: (C,).  Returns (B, C, H, W) in x_nchw.dtype."""
    B, C, H, W = x_nchw.shape
    mid = w1.shape[0]
    HW = H * W

    # Lane-dense view: (B, C, H*W) — free reshape from NCHW row-major layout.
    x = x_nchw.reshape(B, C, HW)                          # native dtype, no copy pass
    w1t = jnp.transpose(w1).astype(jnp.float32)           # (C, mid)
    b1r = b1.reshape(1, mid).astype(jnp.float32)
    w2r = w2.astype(jnp.float32)                          # (C, mid)
    b2r = b2.reshape(C, 1).astype(jnp.float32)

    per_image_bytes = C * HW * (x.dtype.itemsize + x.dtype.itemsize)  # in + out
    TB = _pick_batch_block(B, per_image_bytes)
    grid = (B // TB,)

    out = pl.pallas_call(
        _cca_kernel,
        out_shape=jax.ShapeDtypeStruct((B, C, HW), x.dtype),
        grid=grid,
        in_specs=[
            pl.BlockSpec((TB, C, HW), lambda b: (b, 0, 0)),   # TB images, lane-dense
            pl.BlockSpec((C, mid), lambda b: (0, 0)),
            pl.BlockSpec((1, mid), lambda b: (0, 0)),
            pl.BlockSpec((C, mid), lambda b: (0, 0)),
            pl.BlockSpec((C, 1), lambda b: (0, 0)),
        ],
        out_specs=pl.BlockSpec((TB, C, HW), lambda b: (b, 0, 0)),
        compiler_params=pltpu.CompilerParams(
            dimension_semantics=("parallel",)),
    )(x, w1t, b1r, w2r, b2r)

    return out.reshape(B, C, H, W)


def _reference(x, w1, b1, w2, b2):
    """Pure-JAX reference matching the PyTorch CCALayer forward."""
    xf = x.astype(jnp.float32)
    mean = jnp.mean(xf, axis=(2, 3), keepdims=True)                    # avg_pool
    var = jnp.mean((xf - mean) ** 2, axis=(2, 3), keepdims=True)
    y = jnp.sqrt(var) + mean                                           # contrast + pool
    h = jnp.einsum('mc,bcij->bmij', w1, y) + b1.reshape(1, -1, 1, 1)
    h = jnp.maximum(h, 0.0)
    t = jnp.einsum('cm,bmij->bcij', w2, h) + b2.reshape(1, -1, 1, 1)
    z = jax.nn.sigmoid(t)
    return (xf * z).astype(x.dtype)


if __name__ == "__main__":
    B, C, H, W = 2, 64, 16, 16
    reduction = 16
    mid = C // reduction  # = 4

    key = jax.random.PRNGKey(0)
    kx, k1, kb1, k2, kb2 = jax.random.split(key, 5)

    x = jax.random.normal(kx, (B, C, H, W), dtype=jnp.float32)

    # nn.Conv2d(C, C//r, 1) / nn.Conv2d(C//r, C, 1) shaped params (1x1 kernels squeezed).
    bound1 = 1.0 / (C ** 0.5)
    w1 = jax.random.uniform(k1, (mid, C), jnp.float32, -bound1, bound1)
    b1 = jax.random.uniform(kb1, (mid,), jnp.float32, -bound1, bound1)
    bound2 = 1.0 / (mid ** 0.5)
    w2 = jax.random.uniform(k2, (C, mid), jnp.float32, -bound2, bound2)
    b2 = jax.random.uniform(kb2, (C,), jnp.float32, -bound2, bound2)

    out = jax.block_until_ready(cca_layer(x, w1, b1, w2, b2))
    ref = jax.block_until_ready(_reference(x, w1, b1, w2, b2))

    assert out.shape == (B, C, H, W)
    assert out.dtype == x.dtype
    assert jnp.max(jnp.abs(out - ref)) < 1e-4

    print("KERNEL_OK")
</pallas_src>

<mosaic_0001>
module attributes {stable_mosaic.version = 11 : i64} {
  func.func @_cca_kernel(%arg0: i32, %arg1: memref<1x64x256xf32, #tpu.memory_space<vmem>>, %arg2: memref<64x4xf32, #tpu.memory_space<vmem>>, %arg3: memref<1x4xf32, #tpu.memory_space<vmem>>, %arg4: memref<64x4xf32, #tpu.memory_space<vmem>>, %arg5: memref<64x1xf32, #tpu.memory_space<vmem>>, %arg6: memref<1x64x256xf32, #tpu.memory_space<vmem>>) attributes {dimension_semantics = [#tpu.dimension_semantics<parallel>], iteration_bounds = array<i64: 2>, scalar_prefetch = 0 : i64, scratch_operands = 0 : i64, tpu.core_type = #tpu.core_type<tc>, window_params = [{transform_indices = @transform_0, window_bounds = array<i64: 1, 64, 256>}, {pipeline_mode = #tpu.pipeline_mode<synchronous>, transform_indices = @transform_1, window_bounds = array<i64: 64, 4>}, {pipeline_mode = #tpu.pipeline_mode<synchronous>, transform_indices = @transform_2, window_bounds = array<i64: 1, 4>}, {pipeline_mode = #tpu.pipeline_mode<synchronous>, transform_indices = @transform_3, window_bounds = array<i64: 64, 4>}, {pipeline_mode = #tpu.pipeline_mode<synchronous>, transform_indices = @transform_4, window_bounds = array<i64: 64, 1>}, {transform_indices = @transform_5, window_bounds = array<i64: 1, 64, 256>}]} {
    %c0 = arith.constant 0 : index
    %c0_0 = arith.constant 0 : index
    %c0_1 = arith.constant 0 : index
    %0 = vector.load %arg1[%c0, %c0_0, %c0_1] : memref<1x64x256xf32, #tpu.memory_space<vmem>>, vector<1x64x256xf32>
    %cst = arith.constant dense<0.000000e+00> : vector<1x64xf32>
    %1 = vector.multi_reduction <add>, %0, %cst [2] : vector<1x64x256xf32> to vector<1x64xf32>
    %2 = vector.shape_cast %1 : vector<1x64xf32> to vector<1x64x1xf32>
    %3 = arith.mulf %0, %0 : vector<1x64x256xf32>
    %cst_2 = arith.constant dense<0.000000e+00> : vector<1x64xf32>
    %4 = vector.multi_reduction <add>, %3, %cst_2 [2] : vector<1x64x256xf32> to vector<1x64xf32>
    %5 = vector.shape_cast %4 : vector<1x64xf32> to vector<1x64x1xf32>
    %cst_3 = arith.constant 3.906250e-03 : f32
    %6 = vector.broadcast %cst_3 : f32 to vector<1x64x1xf32>
    %7 = arith.mulf %2, %6 : vector<1x64x1xf32>
    %cst_4 = arith.constant 3.906250e-03 : f32
    %8 = vector.broadcast %cst_4 : f32 to vector<1x64x1xf32>
    %9 = arith.mulf %5, %8 : vector<1x64x1xf32>
    %10 = arith.mulf %7, %7 : vector<1x64x1xf32>
    %11 = arith.subf %9, %10 : vector<1x64x1xf32>
    %cst_5 = arith.constant 0.000000e+00 : f32
    %12 = vector.broadcast %cst_5 : f32 to vector<1x64x1xf32>
    %13 = arith.maximumf %11, %12 : vector<1x64x1xf32>
    %14 = math.sqrt %13 : vector<1x64x1xf32>
    %15 = arith.addf %14, %7 : vector<1x64x1xf32>
    %c0_6 = arith.constant 0 : index
    %c0_7 = arith.constant 0 : index
    %16 = vector.load %arg2[%c0_6, %c0_7] : memref<64x4xf32, #tpu.memory_space<vmem>>, vector<64x4xf32>
    %17 = vector.shape_cast %16 : vector<64x4xf32> to vector<1x64x4xf32>
    %18 = vector.broadcast %15 : vector<1x64x1xf32> to vector<1x64x4xf32>
    %19 = arith.mulf %17, %18 : vector<1x64x4xf32>
    %cst_8 = arith.constant dense<0.000000e+00> : vector<1x4xf32>
    %20 = vector.multi_reduction <add>, %19, %cst_8 [1] : vector<1x64x4xf32> to vector<1x4xf32>
    %21 = vector.shape_cast %20 : vector<1x4xf32> to vector<1x1x4xf32>
    %c0_9 = arith.constant 0 : index
    %c0_10 = arith.constant 0 : index
    %22 = vector.load %arg3[%c0_9, %c0_10] : memref<1x4xf32, #tpu.memory_space<vmem>>, vector<1x4xf32>
    %23 = vector.shape_cast %22 : vector<1x4xf32> to vector<1x1x4xf32>
    %24 = arith.addf %21, %23 : vector<1x1x4xf32>
    %cst_11 = arith.constant 0.000000e+00 : f32
    %25 = vector.broadcast %cst_11 : f32 to vector<1x1x4xf32>
    %26 = arith.maximumf %24, %25 : vector<1x1x4xf32>
    %c0_12 = arith.constant 0 : index
    %c0_13 = arith.constant 0 : index
    %27 = vector.load %arg4[%c0_12, %c0_13] : memref<64x4xf32, #tpu.memory_space<vmem>>, vector<64x4xf32>
    %28 = vector.shape_cast %27 : vector<64x4xf32> to vector<1x64x4xf32>
    %29 = vector.broadcast %26 : vector<1x1x4xf32> to vector<1x64x4xf32>
    %30 = arith.mulf %28, %29 : vector<1x64x4xf32>
    %cst_14 = arith.constant dense<0.000000e+00> : vector<1x64xf32>
    %31 = vector.multi_reduction <add>, %30, %cst_14 [2] : vector<1x64x4xf32> to vector<1x64xf32>
    %32 = vector.shape_cast %31 : vector<1x64xf32> to vector<1x64x1xf32>
    %c0_15 = arith.constant 0 : index
    %c0_16 = arith.constant 0 : index
    %33 = vector.load %arg5[%c0_15, %c0_16] : memref<64x1xf32, #tpu.memory_space<vmem>>, vector<64x1xf32>
    %34 = vector.shape_cast %33 : vector<64x1xf32> to vector<1x64x1xf32>
    %35 = arith.addf %32, %34 : vector<1x64x1xf32>
    %36 = arith.negf %35 : vector<1x64x1xf32>
    %37 = math.exp %36 : vector<1x64x1xf32>
    %cst_17 = arith.constant 1.000000e+00 : f32
    %38 = vector.broadcast %cst_17 : f32 to vector<1x64x1xf32>
    %39 = arith.addf %38, %37 : vector<1x64x1xf32>
    %40 = arith.divf %38, %39 : vector<1x64x1xf32>
    %41 = vector.broadcast %40 : vector<1x64x1xf32> to vector<1x64x256xf32>
    %42 = arith.mulf %0, %41 : vector<1x64x256xf32>
    %c0_18 = arith.constant 0 : index
    %c0_19 = arith.constant 0 : index
    %c0_20 = arith.constant 0 : index
    %43 = vector.load %arg6[%c0_18, %c0_19, %c0_20] : memref<1x64x256xf32, #tpu.memory_space<vmem>>, vector<1x64x256xf32>
    tpu.vector_store %arg6[%c0_18, %c0_19, %c0_20], %42 {strides = array<i32>} : memref<1x64x256xf32, #tpu.memory_space<vmem>>, vector<1x64x256xf32>,
    return
  }
  func.func @transform_0(%arg0: i32) -> (i32, i32, i32) {
    %c0_i32 = arith.constant 0 : i32
    %c0_i32_0 = arith.constant 0 : i32
    %c0_i32_1 = arith.constant 0 : i32
    return %arg0, %c0_i32, %c0_i32_0 : i32, i32, i32
  }
  func.func @transform_1(%arg0: i32) -> (i32, i32) {
    %c0_i32 = arith.constant 0 : i32
    %c0_i32_0 = arith.constant 0 : i32
    %c0_i32_1 = arith.constant 0 : i32
    return %c0_i32, %c0_i32_0 : i32, i32
  }
  func.func @transform_2(%arg0: i32) -> (i32, i32) {
    %c0_i32 = arith.constant 0 : i32
    %c0_i32_0 = arith.constant 0 : i32
    %c0_i32_1 = arith.constant 0 : i32
    return %c0_i32, %c0_i32_0 : i32, i32
  }
  func.func @transform_3(%arg0: i32) -> (i32, i32) {
    %c0_i32 = arith.constant 0 : i32
    %c0_i32_0 = arith.constant 0 : i32
    %c0_i32_1 = arith.constant 0 : i32
    return %c0_i32, %c0_i32_0 : i32, i32
  }
  func.func @transform_4(%arg0: i32) -> (i32, i32) {
    %c0_i32 = arith.constant 0 : i32
    %c0_i32_0 = arith.constant 0 : i32
    %c0_i32_1 = arith.constant 0 : i32
    return %c0_i32, %c0_i32_0 : i32, i32
  }
  func.func @transform_5(%arg0: i32) -> (i32, i32, i32) {
    %c0_i32 = arith.constant 0 : i32
    %c0_i32_0 = arith.constant 0 : i32
    %c0_i32_1 = arith.constant 0 : i32
    return %arg0, %c0_i32, %c0_i32_0 : i32, i32, i32
  }
}

</mosaic_0001>

<llo_original>
// kernel: tpu_custom_call.1
$region0: #{tpu_custom_call.1}
  #allocation0 [shape = 'u32[]', space=smem, size = 0x4, offset = 0x4, fixed_abs, tag = 'smem constant byte address 0x4 - core index']
  #allocation1 [shape = 'u32[144,128]{1,0:T(1,128)}', space=vmem, size = 0x12000, scoped, tag = 'internal scratch']
  %s0 = inlined_call_operand.hbm [shape: f32[2,64,256], index: 0, kind: input, shape index: {}]
  %s1 = inlined_call_operand.vmem [shape: f32[64,4], index: 1, kind: input, shape index: {}]
  %s2 = inlined_call_operand.vmem [shape: f32[1,4], index: 2, kind: input, shape index: {}]
  %s3 = inlined_call_operand.vmem [shape: f32[64,4], index: 3, kind: input, shape index: {}]
  %s4 = inlined_call_operand.vmem [shape: f32[64,1], index: 4, kind: input, shape index: {}]
  %s5 = inlined_call_operand.hbm [shape: f32[2,64,256], index: 5, kind: output, shape index: {}]
  %s6 = sld [smem:[#allocation0]]
  $region57: #{tpu_custom_call.1} parent=0
    _
  %s8 = ssub.s32 1, %s6
  %s9 = scalar_select 0, %s8, %s6
  $region1: #{tpu_custom_call.1} parent=0
    #allocation2 [shape = 'u8[131072]{0}', space=vmem, size = 0x20000, scoped, tag = 'input window, operand 0']
    #allocation3 [shape = 's32[2]{0}', space=sflag, size = 0x8, scoped, tag = 'scoped memory for tpu_custom_call.1']
    #allocation4 [shape = 's32[2]{0}', space=sflag, size = 0x8, scoped, tag = 'scoped memory for tpu_custom_call.1']
    #allocation5 [shape = 'u8[131072]{0}', space=vmem, size = 0x20000, scoped, tag = 'output window, operand 0']
    %10 = vsyncpa [#allocation3], 0
    %s11 = scalar_lea.sflag [#allocation3], 1
    %12 = vsyncpa %s11, 0
    %13 = vsyncpa [#allocation4], 0
    %s14 = scalar_lea.sflag [#allocation4], 1
    %15 = vsyncpa %s14, 0
    loop: start=0, step=1, limit=4
    $region2: #{tpu_custom_call.1} parent=1 // loop_pre_header
      _
    $region3: #{tpu_custom_call.1} parent=1 // loop_header
      %s17 = sphi 0, %s21
      %p18 = scmp.ge.s32.totalorder %s17, 4
      %s27 = sphi 0, %s29
      %s30 = sphi 0, %s27
      %s31 = sphi 0, %s30
      %s47 = sphi 0, %s31
      %s51 = sphi 0, %s51
      %s53 = sphi 0, %s51
      %s54 = sphi 0, %s53
      %s68 = sphi 0, %s54
      %s72 = sphi 0, %s72
      %s74 = sphi 0, %s72
      %s75 = sphi 0, %s74
      %s89 = sphi 0, %s75
      %s93 = sphi 0, %s93
      %s95 = sphi 0, %s93
      %s96 = sphi 0, %s95
      %s110 = sphi 0, %s96
      %s114 = sphi 0, %s114
      %s116 = sphi 0, %s114
      %s117 = sphi 0, %s116
      %s131 = sphi 0, %s117
      %s137 = sphi 0, %s139
      %s140 = sphi 0, %s137
      %s141 = sphi 0, %s140
      %s157 = sphi 0, %s141
    $region4: #{tpu_custom_call.1} parent=1 // loop_header_branch
      %20 = sbr.rel (%p18) target = $region8
    $region5: #{tpu_custom_call.1} parent=1 // loop_body
      %s22 = ssub.s32 %s17, 1
      %s23 = ssub.s32 %s17, 2
      %s24 = sadd.s32 %s17, 1
      %s25 = ssub.s32 %s17, %s24
      %p26 = scmp.eq.s32.totalorder %s25, 0
      %s28 = sadd.s32 %s27, 1
      %s29 = scalar_select %p26, %s27, %s28
      %p32 = pneg %p26
      %p33 = scmp.eq.s32.totalorder %s17, 1
      %p34 = por %p32, %p33
      %p35 = scmp.ne.s32.totalorder %s27, %s30
      %p36 = scmp.eq.s32.totalorder %s17, 0
      %p37 = por %p35, %p36
      %p38 = scmp.ne.s32.totalorder %s27, %s30
      %p39 = scmp.eq.s32.totalorder %s22, 1
      %p40 = por %p38, %p39
      %p41 = scmp.ne.s32.totalorder %s30, %s31
      %p42 = scmp.eq.s32.totalorder %s22, 0
      %p43 = por %p41, %p42
      %p44 = scmp.ne.s32.totalorder %s30, %s31
      %p45 = scmp.eq.s32.totalorder %s23, 1
      %p46 = por %p44, %p45
      %p48 = scmp.ne.s32.totalorder %s31, %s47
      %p49 = scmp.eq.s32.totalorder %s23, 0
      %p50 = por %p48, %p49
      %s52 = sadd.s32 %s51, 1
      %p55 = scmp.eq.s32.totalorder %s17, 1
      %p56 = scmp.ne.s32.totalorder %s51, %s53
      %p57 = scmp.eq.s32.totalorder %s17, 0
      %p58 = por %p56, %p57
      %p59 = scmp.ne.s32.totalorder %s51, %s53
      %p60 = scmp.eq.s32.totalorder %s22, 1
      %p61 = por %p59, %p60
      %p62 = scmp.ne.s32.totalorder %s53, %s54
      %p63 = scmp.eq.s32.totalorder %s22, 0
      %p64 = por %p62, %p63
      %p65 = scmp.ne.s32.totalorder %s53, %s54
      %p66 = scmp.eq.s32.totalorder %s23, 1
      %p67 = por %p65, %p66
      %p69 = scmp.ne.s32.totalorder %s54, %s68
      %p70 = scmp.eq.s32.totalorder %s23, 0
      %p71 = por %p69, %p70
      %s73 = sadd.s32 %s72, 1
      %p76 = scmp.eq.s32.totalorder %s17, 1
      %p77 = scmp.ne.s32.totalorder %s72, %s74
      %p78 = scmp.eq.s32.totalorder %s17, 0
      %p79 = por %p77, %p78
      %p80 = scmp.ne.s32.totalorder %s72, %s74
      %p81 = scmp.eq.s32.totalorder %s22, 1
      %p82 = por %p80, %p81
      %p83 = scmp.ne.s32.totalorder %s74, %s75
      %p84 = scmp.eq.s32.totalorder %s22, 0
      %p85 = por %p83, %p84
      %p86 = scmp.ne.s32.totalorder %s74, %s75
      %p87 = scmp.eq.s32.totalorder %s23, 1
      %p88 = por %p86, %p87
      %p90 = scmp.ne.s32.totalorder %s75, %s89
      %p91 = scmp.eq.s32.totalorder %s23, 0
      %p92 = por %p90, %p91
      %s94 = sadd.s32 %s93, 1
      %p97 = scmp.eq.s32.totalorder %s17, 1
      %p98 = scmp.ne.s32.totalorder %s93, %s95
      %p99 = scmp.eq.s32.totalorder %s17, 0
      %p100 = por %p98, %p99
      %p101 = scmp.ne.s32.totalorder %s93, %s95
      %p102 = scmp.eq.s32.totalorder %s22, 1
      %p103 = por %p101, %p102
      %p104 = scmp.ne.s32.totalorder %s95, %s96
      %p105 = scmp.eq.s32.totalorder %s22, 0
      %p106 = por %p104, %p105
      %p107 = scmp.ne.s32.totalorder %s95, %s96
      %p108 = scmp.eq.s32.totalorder %s23, 1
      %p109 = por %p107, %p108
      %p111 = scmp.ne.s32.totalorder %s96, %s110
      %p112 = scmp.eq.s32.totalorder %s23, 0
      %p113 = por %p111, %p112
      %s115 = sadd.s32 %s114, 1
      %p118 = scmp.eq.s32.totalorder %s17, 1
      %p119 = scmp.ne.s32.totalorder %s114, %s116
      %p120 = scmp.eq.s32.totalorder %s17, 0
      %p121 = por %p119, %p120
      %p122 = scmp.ne.s32.totalorder %s114, %s116
      %p123 = scmp.eq.s32.totalorder %s22, 1
      %p124 = por %p122, %p123
      %p125 = scmp.ne.s32.totalorder %s116, %s117
      %p126 = scmp.eq.s32.totalorder %s22, 0
      %p127 = por %p125, %p126
      %p128 = scmp.ne.s32.totalorder %s116, %s117
      %p129 = scmp.eq.s32.totalorder %s23, 1
      %p130 = por %p128, %p129
      %p132 = scmp.ne.s32.totalorder %s117, %s131
      %p133 = scmp.eq.s32.totalorder %s23, 0
      %p134 = por %p132, %p133
      %s135 = ssub.s32 %s17, %s24
      %p136 = scmp.eq.s32.totalorder %s135, 0
      %s138 = sadd.s32 %s137, 1
      %s139 = scalar_select %p136, %s137, %s138
      %p142 = pneg %p136
      %p143 = scmp.eq.s32.totalorder %s17, 1
      %p144 = por %p142, %p143
      %p145 = scmp.ne.s32.totalorder %s137, %s140
      %p146 = scmp.eq.s32.totalorder %s17, 0
      %p147 = por %p145, %p146
      %p148 = scmp.ne.s32.totalorder %s137, %s140
      %p149 = scmp.eq.s32.totalorder %s22, 1
      %p150 = por %p148, %p149
      %p151 = scmp.ne.s32.totalorder %s140, %s141
      %p152 = scmp.eq.s32.totalorder %s22, 0
      %p153 = por %p151, %p152
      %p154 = scmp.ne.s32.totalorder %s140, %s141
      %p155 = scmp.eq.s32.totalorder %s23, 1
      %p156 = por %p154, %p155
      %p158 = scmp.ne.s32.totalorder %s141, %s157
      %p159 = scmp.eq.s32.totalorder %s23, 0
      %p160 = por %p158, %p159
      %p161 = scmp.le.s32.totalorder 1, %s17
      %p162 = scmp.lt.s32.totalorder %s17, 3
      %p163 = pnand %p161, %p162
      %p164 = pneg %p163
      // Predicated region
      $region9: #{tpu_custom_call.1} parent=5 // pred_check
        _
      $region10: #{tpu_custom_call.1} parent=5 // pred_check_branch
        %166 = sbr.rel (%p163) target = $region12
      $region11: #{tpu_custom_call.1} parent=5 // pred_region
        %s167 = ssub.s32 %s17, 1
        // Predicated region
        $region13: #{tpu_custom_call.1} parent=11 // pred_check
          %p168 = pneg %p64
        $region14: #{tpu_custom_call.1} parent=11 // pred_check_branch
          %170 = sbr.rel (%p168) target = $region16
        $region15: #{tpu_custom_call.1} parent=11 // pred_region
          _
        $region16: #{tpu_custom_call.1} parent=11 // pred_fallthru
          _
        // Predicated region
        $region17: #{tpu_custom_call.1} parent=11 // pred_check
          %p171 = pneg %p85
        $region18: #{tpu_custom_call.1} parent=11 // pred_check_branch
          %173 = sbr.rel (%p171) target = $region20
        $region19: #{tpu_custom_call.1} parent=11 // pred_region
          _
        $region20: #{tpu_custom_call.1} parent=11 // pred_fallthru
          _
        // Predicated region
        $region21: #{tpu_custom_call.1} parent=11 // pred_check
          %p174 = pneg %p106
        $region22: #{tpu_custom_call.1} parent=11 // pred_check_branch
          %176 = sbr.rel (%p174) target = $region24
        $region23: #{tpu_custom_call.1} parent=11 // pred_region
          _
        $region24: #{tpu_custom_call.1} parent=11 // pred_fallthru
          _
        // Predicated region
        $region25: #{tpu_custom_call.1} parent=11 // pred_check
          %p177 = pneg %p127
        $region26: #{tpu_custom_call.1} parent=11 // pred_check_branch
          %179 = sbr.rel (%p177) target = $region28
        $region27: #{tpu_custom_call.1} parent=11 // pred_region
          _
        $region28: #{tpu_custom_call.1} parent=11 // pred_fallthru
          _
      $region12: #{tpu_custom_call.1} parent=5 // pred_fallthru
        _
      %p180 = scmp.lt.s32.totalorder %s17, 2
      // Predicated region
      $region29: #{tpu_custom_call.1} parent=5 // pred_check
        %p181 = pneg %p180
      $region30: #{tpu_custom_call.1} parent=5 // pred_check_branch
        %183 = sbr.rel (%p181) target = $region32
      $region31: #{tpu_custom_call.1} parent=5 // pred_region
        // Predicated region
        $region33: #{tpu_custom_call.1} parent=31 // pred_check
          %p184 = pneg %p37
        $region34: #{tpu_custom_call.1} parent=31 // pred_check_branch
          %186 = sbr.rel (%p184) target = $region36
        $region35: #{tpu_custom_call.1} parent=31 // pred_region
          %s187 = sand.u32 %s27, 1
          %s188 = scalar_lea.sflag [#allocation3], %s187
          %s189 = sand.u32 %s27, 1
          %s190 = smul.addr %s189, 128
          %s191 = scalar_lea.vmem [#allocation2], %s190
          %s193 = ssub.s32 2048, 2048
          %194 = vsyncadd %s188, %s193
          %s195 = smul.addr %s17, 16
          %s196 = smul.addr %s195, 128
          %s197 = scalar_lea.hbm %s0, %s196
          %s198 = sshll.u32 %s191, 4
          %s199 = int_to_ptr.vmem [resolvable:$true] %s198
          %204 = dma.hbm_to_vmem [thread:$0]  %s197, 2048, %s199, %s188, 256, 256, 16
        $region36: #{tpu_custom_call.1} parent=31 // pred_fallthru
          _
      $region32: #{tpu_custom_call.1} parent=5 // pred_fallthru
        _
      %p205 = scmp.le.s32.totalorder 1, %s17
      %p206 = scmp.lt.s32.totalorder %s17, 3
      %p207 = pnand %p205, %p206
      %p208 = pneg %p207
      // Predicated region
      $region37: #{tpu_custom_call.1} parent=5 // pred_check
        _
      $region38: #{tpu_custom_call.1} parent=5 // pred_check_branch
        %210 = sbr.rel (%p207) target = $region40
      $region39: #{tpu_custom_call.1} parent=5 // pred_region
        %s211 = ssub.s32 %s17, 1
        %s212 = sand.u32 %s30, 1
        %s213 = scalar_lea.sflag [#allocation3], %s212
        %s214 = sand.u32 %s30, 1
        %s215 = smul.addr %s214, 128
        %s216 = scalar_lea.vmem [#allocation2], %s215
        // Predicated region
        $region41: #{tpu_custom_call.1} parent=39 // pred_check
          %p217 = pneg %p43
        $region42: #{tpu_custom_call.1} parent=39 // pred_check_branch
          %219 = sbr.rel (%p217) target = $region44
        $region43: #{tpu_custom_call.1} parent=39 // pred_region
          %220 = dma.done %s213, 2048
        $region44: #{tpu_custom_call.1} parent=39 // pred_fallthru
          _
        %s221 = sand.u32 %s30, 1
        %s222 = scalar_lea.sflag [#allocation3], %s221
        %s223 = sand.u32 %s30, 1
        %s224 = smul.addr %s223, 128
        %s225 = scalar_lea.vmem [#allocation2], %s224
        %p226 = pneg %p43
        %p227 = pneg %p40
        %p228 = pneg %p64
        %p229 = pneg %p61
        %p230 = pneg %p85
        %p231 = pneg %p82
        %p232 = pneg %p106
        %p233 = pneg %p103
        %p234 = pneg %p127
        %p235 = pneg %p124
        %p236 = pneg %p153
        %p237 = pneg %p150
        %s238 = sand.u32 %s140, 1
        %s239 = scalar_lea.sflag [#allocation4], %s238
        %s240 = sand.u32 %s140, 1
        %s241 = smul.addr %s240, 128
        %s242 = scalar_lea.vmem [#allocation5], %s241
        %v243 = vld [vmem:[%s216] sm:$0xff]
        %v244 = vld [vmem:[%s216 + $0x8] sm:$0xff]
        %v245 = vld [vmem:[%s216 + $0x10] sm:$0xff]
        %v246 = vld [vmem:[%s216 + $0x18] sm:$0xff]
        %v247 = vld [vmem:[%s216 + $0x20] sm:$0xff]
        %v248 = vld [vmem:[%s216 + $0x28] sm:$0xff]
        %v249 = vld [vmem:[%s216 + $0x30] sm:$0xff]
        %v250 = vld [vmem:[%s216 + $0x38] sm:$0xff]
        %v251 = vld [vmem:[%s216 + $0x40] sm:$0xff]
        %v252 = vld [vmem:[%s216 + $0x48] sm:$0xff]
        %v253 = vld [vmem:[%s216 + $0x50] sm:$0xff]
        %v254 = vld [vmem:[%s216 + $0x58] sm:$0xff]
        %v255 = vld [vmem:[%s216 + $0x60] sm:$0xff]
        %v256 = vld [vmem:[%s216 + $0x68] sm:$0xff]
        %v257 = vld [vmem:[%s216 + $0x70] sm:$0xff]
        %v258 = vld [vmem:[%s216 + $0x78] sm:$0xff]
        %v259 = vadd.f32 %v243, %v244
        %260 = vadd.xlane.f32.xlu0 %v259
        %v261 = vpop.xlane.xlu0 %260
        %v262 = vadd.f32 %v245, %v246
        %263 = vadd.xlane.f32.xlu0 %v262
        %v264 = vpop.xlane.xlu0 %263
        %v265 = vadd.f32 %v247, %v248
        %266 = vadd.xlane.f32.xlu0 %v265
        %v267 = vpop.xlane.xlu0 %266
        %v268 = vadd.f32 %v249, %v250
        %269 = vadd.xlane.f32.xlu0 %v268
        %v270 = vpop.xlane.xlu0 %269
        %v271 = vadd.f32 %v251, %v252
        %272 = vadd.xlane.f32.xlu0 %v271
        %v273 = vpop.xlane.xlu0 %272
        %v274 = vadd.f32 %v253, %v254
        %275 = vadd.xlane.f32.xlu0 %v274
        %v276 = vpop.xlane.xlu0 %275
        %v277 = vadd.f32 %v255, %v256
        %278 = vadd.xlane.f32.xlu0 %v277
        %v279 = vpop.xlane.xlu0 %278
        %v280 = vadd.f32 %v257, %v258
        %281 = vadd.xlane.f32.xlu0 %v280
        %v282 = vpop.xlane.xlu0 %281
        %v283 = vmul.f32 %v243, %v243
        %v284 = vmul.f32 %v244, %v244
        %v285 = vmul.f32 %v245, %v245
        %v286 = vmul.f32 %v246, %v246
        %v287 = vmul.f32 %v247, %v247
        %v288 = vmul.f32 %v248, %v248
        %v289 = vmul.f32 %v249, %v249
        %v290 = vmul.f32 %v250, %v250
        %v291 = vmul.f32 %v251, %v251
        %v292 = vmul.f32 %v252, %v252
        %v293 = vmul.f32 %v253, %v253
        %v294 = vmul.f32 %v254, %v254
        %v295 = vmul.f32 %v255, %v255
        %v296 = vmul.f32 %v256, %v256
        %v297 = vmul.f32 %v257, %v257
        %v298 = vmul.f32 %v258, %v258
        %v299 = vadd.f32 %v283, %v284
        %300 = vadd.xlane.f32.xlu0 %v299
        %v301 = vpop.xlane.xlu0 %300
        %v302 = vadd.f32 %v285, %v286
        %303 = vadd.xlane.f32.xlu0 %v302
        %v304 = vpop.xlane.xlu0 %303
        %v305 = vadd.f32 %v287, %v288
        %306 = vadd.xlane.f32.xlu0 %v305
        %v307 = vpop.xlane.xlu0 %306
        %v308 = vadd.f32 %v289, %v290
        %309 = vadd.xlane.f32.xlu0 %v308
        %v310 = vpop.xlane.xlu0 %309
        %v311 = vadd.f32 %v291, %v292
        %312 = vadd.xlane.f32.xlu0 %v311
        %v313 = vpop.xlane.xlu0 %312
        %v314 = vadd.f32 %v293, %v294
        %315 = vadd.xlane.f32.xlu0 %v314
        %v316 = vpop.xlane.xlu0 %315
        %v317 = vadd.f32 %v295, %v296
        %318 = vadd.xlane.f32.xlu0 %v317
        %v319 = vpop.xlane.xlu0 %318
        %v320 = vadd.f32 %v297, %v298
        %321 = vadd.xlane.f32.xlu0 %v320
        %v322 = vpop.xlane.xlu0 %321
        %v323 = vmul.f32 %v261, 0.00390625
        %v324 = vmul.f32 %v264, 0.00390625
        %v325 = vmul.f32 %v267, 0.00390625
        %v326 = vmul.f32 %v270, 0.00390625
        %v327 = vmul.f32 %v273, 0.00390625
        %v328 = vmul.f32 %v276, 0.00390625
        %v329 = vmul.f32 %v279, 0.00390625
        %v330 = vmul.f32 %v282, 0.00390625
        %v331 = vmul.f32 %v301, 0.00390625
        %v332 = vmul.f32 %v304, 0.00390625
        %v333 = vmul.f32 %v307, 0.00390625
        %v334 = vmul.f32 %v310, 0.00390625
        %v335 = vmul.f32 %v313, 0.00390625
        %v336 = vmul.f32 %v316, 0.00390625
        %v337 = vmul.f32 %v319, 0.00390625
        %v338 = vmul.f32 %v322, 0.00390625
        %v339 = vmul.f32 %v323, %v323
        %v340 = vmul.f32 %v324, %v324
        %v341 = vmul.f32 %v325, %v325
        %v342 = vmul.f32 %v326, %v326
        %v343 = vmul.f32 %v327, %v327
        %v344 = vmul.f32 %v328, %v328
        %v345 = vmul.f32 %v329, %v329
        %v346 = vmul.f32 %v330, %v330
        %v347 = vsub.f32 %v331, %v339
        %v348 = vsub.f32 %v332, %v340
        %v349 = vsub.f32 %v333, %v341
        %v350 = vsub.f32 %v334, %v342
        %v351 = vsub.f32 %v335, %v343
        %v352 = vsub.f32 %v336, %v344
        %v353 = vsub.f32 %v337, %v345
        %v354 = vsub.f32 %v338, %v346
        %v355 = vmax.f32 %v347, 0.0
        %v356 = vmax.f32 %v348, 0.0
        %v357 = vmax.f32 %v349, 0.0
        %v358 = vmax.f32 %v350, 0.0
        %v359 = vmax.f32 %v351, 0.0
        %v360 = vmax.f32 %v352, 0.0
        %v361 = vmax.f32 %v353, 0.0
        %v362 = vmax.f32 %v354, 0.0
        %v363 = vrsqrt.pop %v355
        %v364 = vmul.f32 %v355, %v363
        %vm365 = vcmp.eq.f32.partialorder %v355, inf
        %v366 = vsel %vm365, %v355, %v364
        %vm367 = vcmp.eq.f32.partialorder %v355, 0.0
        %v368 = vand.u32 %v355, 2147483648
        %v369 = vsel %vm367, %v368, %v366
        %v370 = vrsqrt.pop %v356
        %v371 = vmul.f32 %v356, %v370
        %vm372 = vcmp.eq.f32.partialorder %v356, inf
        %v373 = vsel %vm372, %v356, %v371
        %vm374 = vcmp.eq.f32.partialorder %v356, 0.0
        %v375 = vand.u32 %v356, 2147483648
        %v376 = vsel %vm374, %v375, %v373
        %v377 = vrsqrt.pop %v357
        %v378 = vmul.f32 %v357, %v377
        %vm379 = vcmp.eq.f32.partialorder %v357, inf
        %v380 = vsel %vm379, %v357, %v378
        %vm381 = vcmp.eq.f32.partialorder %v357, 0.0
        %v382 = vand.u32 %v357, 2147483648
        %v383 = vsel %vm381, %v382, %v380
        %v384 = vrsqrt.pop %v358
        %v385 = vmul.f32 %v358, %v384
        %vm386 = vcmp.eq.f32.partialorder %v358, inf
        %v387 = vsel %vm386, %v358, %v385
        %vm388 = vcmp.eq.f32.partialorder %v358, 0.0
        %v389 = vand.u32 %v358, 2147483648
        %v390 = vsel %vm388, %v389, %v387
        %v391 = vrsqrt.pop %v359
        %v392 = vmul.f32 %v359, %v391
        %vm393 = vcmp.eq.f32.partialorder %v359, inf
        %v394 = vsel %vm393, %v359, %v392
        %vm395 = vcmp.eq.f32.partialorder %v359, 0.0
        %v396 = vand.u32 %v359, 2147483648
        %v397 = vsel %vm395, %v396, %v394
        %v398 = vrsqrt.pop %v360
        %v399 = vmul.f32 %v360, %v398
        %vm400 = vcmp.eq.f32.partialorder %v360, inf
        %v401 = vsel %vm400, %v360, %v399
        %vm402 = vcmp.eq.f32.partialorder %v360, 0.0
        %v403 = vand.u32 %v360, 2147483648
        %v404 = vsel %vm402, %v403, %v401
        %v405 = vrsqrt.pop %v361
        %v406 = vmul.f32 %v361, %v405
        %vm407 = vcmp.eq.f32.partialorder %v361, inf
        %v408 = vsel %vm407, %v361, %v406
        %vm409 = vcmp.eq.f32.partialorder %v361, 0.0
        %v410 = vand.u32 %v361, 2147483648
        %v411 = vsel %vm409, %v410, %v408
        %v412 = vrsqrt.pop %v362
        %v413 = vmul.f32 %v362, %v412
        %vm414 = vcmp.eq.f32.partialorder %v362, inf
        %v415 = vsel %vm414, %v362, %v413
        %vm416 = vcmp.eq.f32.partialorder %v362, 0.0
        %v417 = vand.u32 %v362, 2147483648
        %v418 = vsel %vm416, %v417, %v415
        %v419 = vadd.f32 %v369, %v323
        %v420 = vadd.f32 %v376, %v324
        %v421 = vadd.f32 %v383, %v325
        %v422 = vadd.f32 %v390, %v326
        %v423 = vadd.f32 %v397, %v327
        %v424 = vadd.f32 %v404, %v328
        %v425 = vadd.f32 %v411, %v329
        %v426 = vadd.f32 %v418, %v330
        %v427 = vld [vmem:[%s1] sm:$0xff]
        %v428 = vld [vmem:[%s1 + $0x8] sm:$0xff]
        %v429 = vld [vmem:[%s1 + $0x10] sm:$0xff]
        %v430 = vld [vmem:[%s1 + $0x18] sm:$0xff]
        %v431 = vld [vmem:[%s1 + $0x20] sm:$0xff]
        %v432 = vld [vmem:[%s1 + $0x28] sm:$0xff]
        %v433 = vld [vmem:[%s1 + $0x30] sm:$0xff]
        %v434 = vld [vmem:[%s1 + $0x38] sm:$0xff]
        %v435 = vmul.f32 %v427, %v419
        %v436 = vmul.f32 %v428, %v420
        %v437 = vmul.f32 %v429, %v421
        %v438 = vmul.f32 %v430, %v422
        %v439 = vmul.f32 %v431, %v423
        %v440 = vmul.f32 %v432, %v424
        %v441 = vmul.f32 %v433, %v425
        %v442 = vmul.f32 %v434, %v426
        %vm443 = vcmask 31744
        %v444 = vsel %vm443, %v435, 0.0
        %v445 = vsel %vm443, %v436, 0.0
        %v446 = vadd.f32 %v444, %v445
        %v447 = vsel %vm443, %v437, 0.0
        %v448 = vadd.f32 %v446, %v447
        %v449 = vsel %vm443, %v438, 0.0
        %v450 = vadd.f32 %v448, %v449
        %v451 = vsel %vm443, %v439, 0.0
        %v452 = vadd.f32 %v450, %v451
        %v453 = vsel %vm443, %v440, 0.0
        %v454 = vadd.f32 %v452, %v453
        %v455 = vsel %vm443, %v441, 0.0
        %v456 = vadd.f32 %v454, %v455
        %v457 = vsel %vm443, %v442, 0.0
        %v458 = vadd.f32 %v456, %v457
        %v459 = vrot.slane %v458, 4
        %v460 = vadd.f32 %v458, %v459
        %v461 = vrot.slane %v460, 2
        %v462 = vadd.f32 %v460, %v461
        %v463 = vrot.slane %v462, 1
        %v464 = vadd.f32 %v462, %v463
        %v465 = vld [vmem:[%s2] sm:$0x1]
        %v466 = vadd.f32 %v464, %v465
        %v467 = vmax.f32 %v466, 0.0
        %v468 = vld [vmem:[%s3] sm:$0xff]
        %v469 = vld [vmem:[%s3 + $0x8] sm:$0xff]
        %v470 = vld [vmem:[%s3 + $0x10] sm:$0xff]
        %v471 = vld [vmem:[%s3 + $0x18] sm:$0xff]
        %v472 = vld [vmem:[%s3 + $0x20] sm:$0xff]
        %v473 = vld [vmem:[%s3 + $0x28] sm:$0xff]
        %v474 = vld [vmem:[%s3 + $0x30] sm:$0xff]
        %v475 = vld [vmem:[%s3 + $0x38] sm:$0xff]
        %v476 = vlaneseq
        %v477 = vshrl.u32 %v476, 7
        %v478 = vsub.s32 0, %v477
        %v479 = vrot.slane %v467, %v478
        %v480 = vmul.f32 %v468, %v479
        %v481 = vmul.f32 %v469, %v479
        %v482 = vmul.f32 %v470, %v479
        %v483 = vmul.f32 %v471, %v479
        %v484 = vmul.f32 %v472, %v479
        %v485 = vmul.f32 %v473, %v479
        %v486 = vmul.f32 %v474, %v479
        %v487 = vmul.f32 %v475, %v479
        %v488 = vsel %vm443, %v480, 0.0
        %489 = vadd.xlane.f32.xlu0 %v488
        %v490 = vpop.xlane.xlu0 %489
        %v491 = vsel %vm443, %v481, 0.0
        %492 = vadd.xlane.f32.xlu0 %v491
        %v493 = vpop.xlane.xlu0 %492
        %v494 = vsel %vm443, %v482, 0.0
        %495 = vadd.xlane.f32.xlu0 %v494
        %v496 = vpop.xlane.xlu0 %495
        %v497 = vsel %vm443, %v483, 0.0
        %498 = vadd.xlane.f32.xlu0 %v497
        %v499 = vpop.xlane.xlu0 %498
        %v500 = vsel %vm443, %v484, 0.0
        %501 = vadd.xlane.f32.xlu0 %v500
        %v502 = vpop.xlane.xlu0 %501
        %v503 = vsel %vm443, %v485, 0.0
        %504 = vadd.xlane.f32.xlu0 %v503
        %v505 = vpop.xlane.xlu0 %504
        %v506 = vsel %vm443, %v486, 0.0
        %507 = vadd.xlane.f32.xlu0 %v506
        %v508 = vpop.xlane.xlu0 %507
        %v509 = vsel %vm443, %v487, 0.0
        %510 = vadd.xlane.f32.xlu0 %v509
        %v511 = vpop.xlane.xlu0 %510
        %v512 = vld [vmem:[%s4] sm:$0xff]
        %v513 = vld [vmem:[%s4 + $0x8] sm:$0xff]
        %v514 = vld [vmem:[%s4 + $0x10] sm:$0xff]
        %v515 = vld [vmem:[%s4 + $0x18] sm:$0xff]
        %v516 = vld [vmem:[%s4 + $0x20] sm:$0xff]
        %v517 = vld [vmem:[%s4 + $0x28] sm:$0xff]
        %v518 = vld [vmem:[%s4 + $0x30] sm:$0xff]
        %v519 = vld [vmem:[%s4 + $0x38] sm:$0xff]
        %v520 = vadd.f32 %v490, %v512
        %v521 = vadd.f32 %v493, %v513
        %v522 = vadd.f32 %v496, %v514
        %v523 = vadd.f32 %v499, %v515
        %v524 = vadd.f32 %v502, %v516
        %v525 = vadd.f32 %v505, %v517
        %v526 = vadd.f32 %v508, %v518
        %v527 = vadd.f32 %v511, %v519
        %v528 = vxor.u32 %v520, 2147483648
        %v529 = vxor.u32 %v521, 2147483648
        %v530 = vxor.u32 %v522, 2147483648
        %v531 = vxor.u32 %v523, 2147483648
        %v532 = vxor.u32 %v524, 2147483648
        %v533 = vxor.u32 %v525, 2147483648
        %v534 = vxor.u32 %v526, 2147483648
        %v535 = vxor.u32 %v527, 2147483648
        %v536 = vmul.f32 %v528, 1.442695
        %v537 = vpow.pop %v536
        %v538 = vmul.f32 %v529, 1.442695
        %v539 = vpow.pop %v538
        %v540 = vmul.f32 %v530, 1.442695
        %v541 = vpow.pop %v540
        %v542 = vmul.f32 %v531, 1.442695
        %v543 = vpow.pop %v542
        %v544 = vmul.f32 %v532, 1.442695
        %v545 = vpow.pop %v544
        %v546 = vmul.f32 %v533, 1.442695
        %v547 = vpow.pop %v546
        %v548 = vmul.f32 %v534, 1.442695
        %v549 = vpow.pop %v548
        %v550 = vmul.f32 %v535, 1.442695
        %v551 = vpow.pop %v550
        %v552 = vadd.f32 %v537, 1.0
        %v553 = vadd.f32 %v539, 1.0
        %v554 = vadd.f32 %v541, 1.0
        %v555 = vadd.f32 %v543, 1.0
        %v556 = vadd.f32 %v545, 1.0
        %v557 = vadd.f32 %v547, 1.0
        %v558 = vadd.f32 %v549, 1.0
        %v559 = vadd.f32 %v551, 1.0
        %v560 = vrcp.pop %v552
        %v561 = vmul.f32 1.0, %v560
        %v562 = vrcp.pop %v553
        %v563 = vmul.f32 1.0, %v562
        %v564 = vrcp.pop %v554
        %v565 = vmul.f32 1.0, %v564
        %v566 = vrcp.pop %v555
        %v567 = vmul.f32 1.0, %v566
        %v568 = vrcp.pop %v556
        %v569 = vmul.f32 1.0, %v568
        %v570 = vrcp.pop %v557
        %v571 = vmul.f32 1.0, %v570
        %v572 = vrcp.pop %v558
        %v573 = vmul.f32 1.0, %v572
        %v574 = vrcp.pop %v559
        %v575 = vmul.f32 1.0, %v574
        %577 = vset.pattern.permute.xlu0 0
        %578 = vperm.xlu0 %577, %v561
        %v579 = vpop.permute.xlu0 %578
        %582 = vset.pattern.permute.xlu0 0
        %583 = vperm.xlu0 %582, %v563
        %v584 = vpop.permute.xlu0 %583
        %587 = vset.pattern.permute.xlu0 0
        %588 = vperm.xlu0 %587, %v565
        %v589 = vpop.permute.xlu0 %588
        %592 = vset.pattern.permute.xlu0 0
        %593 = vperm.xlu0 %592, %v567
        %v594 = vpop.permute.xlu0 %593
        %597 = vset.pattern.permute.xlu0 0
        %598 = vperm.xlu0 %597, %v569
        %v599 = vpop.permute.xlu0 %598
        %602 = vset.pattern.permute.xlu0 0
        %603 = vperm.xlu0 %602, %v571
        %v604 = vpop.permute.xlu0 %603
        %607 = vset.pattern.permute.xlu0 0
        %608 = vperm.xlu0 %607, %v573
        %v609 = vpop.permute.xlu0 %608
        %612 = vset.pattern.permute.xlu0 0
        %613 = vperm.xlu0 %612, %v575
        %v614 = vpop.permute.xlu0 %613
        %v616 = vmul.f32 %v243, %v579
        %v617 = vmul.f32 %v244, %v579
        %v618 = vmul.f32 %v245, %v584
        %v619 = vmul.f32 %v246, %v584
        %v620 = vmul.f32 %v247, %v589
        %v621 = vmul.f32 %v248, %v589
        %v622 = vmul.f32 %v249, %v594
        %v623 = vmul.f32 %v250, %v594
        %v624 = vmul.f32 %v251, %v599
        %v625 = vmul.f32 %v252, %v599
        %v626 = vmul.f32 %v253, %v604
        %v627 = vmul.f32 %v254, %v604
        %v628 = vmul.f32 %v255, %v609
        %v629 = vmul.f32 %v256, %v609
        %v630 = vmul.f32 %v257, %v614
        %v631 = vmul.f32 %v258, %v614
        %632 = vst [vmem:[%s242] sm:$0xff] %v616
        %633 = vst [vmem:[%s242 + $0x8] sm:$0xff] %v617
        %634 = vst [vmem:[%s242 + $0x10] sm:$0xff] %v618
        %635 = vst [vmem:[%s242 + $0x18] sm:$0xff] %v619
        %636 = vst [vmem:[%s242 + $0x20] sm:$0xff] %v620
        %637 = vst [vmem:[%s242 + $0x28] sm:$0xff] %v621
        %638 = vst [vmem:[%s242 + $0x30] sm:$0xff] %v622
        %639 = vst [vmem:[%s242 + $0x38] sm:$0xff] %v623
        %640 = vst [vmem:[%s242 + $0x40] sm:$0xff] %v624
        %641 = vst [vmem:[%s242 + $0x48] sm:$0xff] %v625
        %642 = vst [vmem:[%s242 + $0x50] sm:$0xff] %v626
        %643 = vst [vmem:[%s242 + $0x58] sm:$0xff] %v627
        %644 = vst [vmem:[%s242 + $0x60] sm:$0xff] %v628
        %645 = vst [vmem:[%s242 + $0x68] sm:$0xff] %v629
        %646 = vst [vmem:[%s242 + $0x70] sm:$0xff] %v630
        %647 = vst [vmem:[%s242 + $0x78] sm:$0xff] %v631
        %s648 = sand.u32 %s140, 1
        %s649 = scalar_lea.sflag [#allocation4], %s648
        %s650 = sand.u32 %s140, 1
        %s651 = smul.addr %s650, 128
        %s652 = scalar_lea.vmem [#allocation5], %s651
        // Predicated region
        $region45: #{tpu_custom_call.1} parent=39 // pred_check
          %p653 = pneg %p150
        $region46: #{tpu_custom_call.1} parent=39 // pred_check_branch
          %655 = sbr.rel (%p653) target = $region48
        $region47: #{tpu_custom_call.1} parent=39 // pred_region
          %s657 = ssub.s32 2048, 2048
          %658 = vsyncadd %s649, %s657
          %s659 = smul.addr %s22, 16
          %s660 = smul.addr %s659, 128
          %s661 = scalar_lea.hbm %s5, %s660
          %s662 = sshll.u32 %s652, 4
          %s663 = int_to_ptr.vmem [resolvable:$true] %s662
          %668 = dma.vmem_to_hbm [thread:$0]  %s663, 2048, %s661, %s649, 256, 256, 16
        $region48: #{tpu_custom_call.1} parent=39 // pred_fallthru
          _
      $region40: #{tpu_custom_call.1} parent=5 // pred_fallthru
        _
      %p669 = scmp.le.s32.totalorder 2, %s17
      // Predicated region
      $region49: #{tpu_custom_call.1} parent=5 // pred_check
        %p670 = pneg %p669
      $region50: #{tpu_custom_call.1} parent=5 // pred_check_branch
        %672 = sbr.rel (%p670) target = $region52
      $region51: #{tpu_custom_call.1} parent=5 // pred_region
        %s673 = ssub.s32 %s17, 2
        // Predicated region
        $region53: #{tpu_custom_call.1} parent=51 // pred_check
          %p674 = pneg %p156
        $region54: #{tpu_custom_call.1} parent=51 // pred_check_branch
          %676 = sbr.rel (%p674) target = $region56
        $region55: #{tpu_custom_call.1} parent=51 // pred_region
          %s677 = sand.u32 %s141, 1
          %s678 = scalar_lea.sflag [#allocation4], %s677
          %s679 = sand.u32 %s141, 1
          %s680 = smul.addr %s679, 128
          %s681 = scalar_lea.vmem [#allocation5], %s680
          %682 = dma.done %s678, 2048
        $region56: #{tpu_custom_call.1} parent=51 // pred_fallthru
          _
      $region52: #{tpu_custom_call.1} parent=5 // pred_fallthru
        _
    $region6: #{tpu_custom_call.1} parent=1 // loop_footer
      %s21 = sadd.s32 1, %s17
    $region7: #{tpu_custom_call.1} parent=1 // loop_footer_branch
      %16 = sbr.rel target = $region3
    $region8: #{tpu_custom_call.1} parent=1 // loop_exit
      _
    %683 = vsyncpa [#allocation3], 1
    %s684 = scalar_lea.sflag [#allocation3], 1
    %685 = vsyncpa %s684, 1
    %686 = vsyncpa [#allocation4], 1
    %s687 = scalar_lea.sflag [#allocation4], 1
    %688 = vsyncpa %s687, 1

</llo_original>
